<compile_context>
chip_gen: v7x
topology: tpu7x:2x2x1
jax: 0.10.0
libtpu: 0.0.40
codegen_flags: <defaults>
</compile_context>

<pallas_src>
import jax
import jax.numpy as jnp
from jax.experimental import pallas as pl
from jax.experimental.pallas import tpu as pltpu

_LANE_CANDIDATES = (2048, 1024, 512, 256, 128)   # lane-dense last-dim choices
_TARGET_TILE_BYTES = 2 * 1024 * 1024             # ~2 MiB per tile per array


def _add_kernel(img_ref, flow_ref, out_ref):
    # Pure vreg->vreg elementwise add on the VPU; cast to the promoted output
    # dtype inside the kernel so the cast is hidden under the HBM DMA.
    out_ref[...] = img_ref[...].astype(out_ref.dtype) + flow_ref[...].astype(out_ref.dtype)


def concatenate_forward(img: jax.Array, flow: jax.Array) -> jax.Array:
    """Reproduces Concatenate.forward(img, flow) == img + flow."""
    assert img.shape == flow.shape, "img and flow must have identical shapes (no broadcasting in reference)"
    orig_shape = img.shape
    out_dtype = jnp.promote_types(img.dtype, flow.dtype)
    total = int(img.size)

    # Zero-size guard: nothing to DMA, pure-JAX fallback.
    if total == 0:
        return (img.astype(out_dtype) + flow.astype(out_dtype)).reshape(orig_shape)

    img_flat = img.reshape(total)
    flow_flat = flow.reshape(total)

    # Pick the widest lane count that divides the flattened size; otherwise pad
    # up to a multiple of 128 lanes (fallback path only; padding is one small
    # HBM copy of each input and is sliced off again on output).
    lanes = None
    for cand in _LANE_CANDIDATES:
        if total % cand == 0:
            lanes = cand
            break
    if lanes is None:
        lanes = 128
        padded = pl.cdiv(total, lanes) * lanes
        pad = padded - total
        img_flat = jnp.pad(img_flat, (0, pad))
        flow_flat = jnp.pad(flow_flat, (0, pad))
    else:
        padded = total

    rows = padded // lanes
    img2 = img_flat.reshape(rows, lanes)
    flow2 = flow_flat.reshape(rows, lanes)

    # Row-tile size: ~2 MiB per array per tile, multiple of 8 sublanes,
    # clamped to the full row extent for tiny inputs (a full-extent block is
    # always legal regardless of (8,128) divisibility).
    itemsize = jnp.dtype(out_dtype).itemsize
    tile_r = max(8, _TARGET_TILE_BYTES // (lanes * itemsize))
    tile_r -= tile_r % 8
    if tile_r >= rows:
        tile_r = rows
    grid = (pl.cdiv(rows, tile_r),)

    bytes_accessed = padded * (jnp.dtype(img.dtype).itemsize
                               + jnp.dtype(flow.dtype).itemsize
                               + itemsize)

    out2 = pl.pallas_call(
        _add_kernel,
        out_shape=jax.ShapeDtypeStruct((rows, lanes), out_dtype),
        grid_spec=pl.GridSpec(
            grid=grid,
            in_specs=[
                pl.BlockSpec((tile_r, lanes), lambda i: (i, 0)),
                pl.BlockSpec((tile_r, lanes), lambda i: (i, 0)),
            ],
            out_specs=pl.BlockSpec((tile_r, lanes), lambda i: (i, 0)),
        ),
        compiler_params=pltpu.CompilerParams(
            dimension_semantics=("parallel",),       # no cross-tile dependence; lets v7x use both TCs
            vmem_limit_bytes=32 * 1024 * 1024,       # headroom above v5e's 16 MiB default, < v7x physical
        ),
        cost_estimate=pl.CostEstimate(
            flops=padded, transcendentals=0, bytes_accessed=bytes_accessed),
    )(img2, flow2)

    out_flat = out2.reshape(padded)
    if padded != total:
        out_flat = out_flat[:total]
    return out_flat.reshape(orig_shape)


# TODO(synk): the rest of Net_V3 (mit_b2 backbone, SelfAttentionBlock, convs,
# BatchNorm/GroupNorm, bilinear upsampling) has no clean standalone Pallas
# equivalent here; only the Concatenate fusion primitive is implemented.

if __name__ == "__main__":
    key = jax.random.PRNGKey(0)
    k_img, k_flow = jax.random.split(key)

    # Small NCHW shapes consistent with the module: batch=2, channels=4, spatial=16x16.
    img = jax.random.normal(k_img, (2, 4, 16, 16), dtype=jnp.float32)
    flow = jax.random.normal(k_flow, (2, 4, 16, 16), dtype=jnp.float32)

    out = concatenate_forward(img, flow)
    jax.block_until_ready(out)
    ref = img + flow
    assert out.shape == ref.shape and out.dtype == ref.dtype
    assert jnp.allclose(out, ref, atol=1e-6, rtol=1e-6)

    # Exercise the multi-tile path (rows > tile_r => grid > 1).
    k1, k2 = jax.random.split(k_flow)
    big_a = jax.random.normal(k1, (2, 64, 64, 128), dtype=jnp.float32)
    big_b = jax.random.normal(k2, (2, 64, 64, 128), dtype=jnp.float32)
    big_out = concatenate_forward(big_a, big_b)
    jax.block_until_ready(big_out)
    assert jnp.allclose(big_out, big_a + big_b, atol=1e-6, rtol=1e-6)

    # Exercise the non-128-divisible (padding) fallback path.
    odd_a = jax.random.normal(k1, (3, 5, 7, 9), dtype=jnp.float32)
    odd_b = jax.random.normal(k2, (3, 5, 7, 9), dtype=jnp.float32)
    odd_out = concatenate_forward(odd_a, odd_b)
    jax.block_until_ready(odd_out)
    assert jnp.allclose(odd_out, odd_a + odd_b, atol=1e-6, rtol=1e-6)

    # Mixed-dtype promotion path (cast happens inside the kernel).
    bf_a = big_a.astype(jnp.bfloat16)
    mix_out = concatenate_forward(bf_a, big_b)
    jax.block_until_ready(mix_out)
    assert mix_out.dtype == jnp.promote_types(jnp.bfloat16, jnp.float32)
    assert jnp.allclose(mix_out, bf_a.astype(jnp.float32) + big_b, atol=1e-2, rtol=1e-2)

    print("KERNEL_OK")
</pallas_src>

<mosaic_0001>
module attributes {stable_mosaic.version = 11 : i64} {
  func.func @_add_kernel(%arg0: i32, %arg1: memref<1x2048xf32, #tpu.memory_space<vmem>>, %arg2: memref<1x2048xf32, #tpu.memory_space<vmem>>, %arg3: memref<1x2048xf32, #tpu.memory_space<vmem>>) attributes {dimension_semantics = [#tpu.dimension_semantics<parallel>], iteration_bounds = array<i64: 1>, scalar_prefetch = 0 : i64, scratch_operands = 0 : i64, tpu.core_type = #tpu.core_type<tc>, window_params = [{transform_indices = @transform_0, window_bounds = array<i64: 1, 2048>}, {transform_indices = @transform_1, window_bounds = array<i64: 1, 2048>}, {transform_indices = @transform_2, window_bounds = array<i64: 1, 2048>}]} {
    %c0 = arith.constant 0 : index
    %c0_0 = arith.constant 0 : index
    %0 = vector.load %arg1[%c0, %c0_0] : memref<1x2048xf32, #tpu.memory_space<vmem>>, vector<1x2048xf32>
    %c0_1 = arith.constant 0 : index
    %c0_2 = arith.constant 0 : index
    %1 = vector.load %arg2[%c0_1, %c0_2] : memref<1x2048xf32, #tpu.memory_space<vmem>>, vector<1x2048xf32>
    %2 = arith.addf %0, %1 : vector<1x2048xf32>
    %c0_3 = arith.constant 0 : index
    %c0_4 = arith.constant 0 : index
    %3 = vector.load %arg3[%c0_3, %c0_4] : memref<1x2048xf32, #tpu.memory_space<vmem>>, vector<1x2048xf32>
    tpu.vector_store %arg3[%c0_3, %c0_4], %2 {strides = array<i32>} : memref<1x2048xf32, #tpu.memory_space<vmem>>, vector<1x2048xf32>,
    return
  }
  func.func @transform_0(%arg0: i32) -> (i32, i32) {
    %c0_i32 = arith.constant 0 : i32
    %c0_i32_0 = arith.constant 0 : i32
    return %arg0, %c0_i32 : i32, i32
  }
  func.func @transform_1(%arg0: i32) -> (i32, i32) {
    %c0_i32 = arith.constant 0 : i32
    %c0_i32_0 = arith.constant 0 : i32
    return %arg0, %c0_i32 : i32, i32
  }
  func.func @transform_2(%arg0: i32) -> (i32, i32) {
    %c0_i32 = arith.constant 0 : i32
    %c0_i32_0 = arith.constant 0 : i32
    return %arg0, %c0_i32 : i32, i32
  }
}

</mosaic_0001>

<llo_original>
// kernel: tpu_custom_call.1
$region0: #{tpu_custom_call.1}
  #allocation0 [shape = 'u32[]', space=smem, size = 0x4, offset = 0x4, fixed_abs, tag = 'smem constant byte address 0x4 - core index']
  #allocation1 [shape = 'u32[144,128]{1,0:T(1,128)}', space=vmem, size = 0x12000, scoped, tag = 'internal scratch']
  %s0 = inlined_call_operand.hbm [shape: f32[1,2048], index: 0, kind: input, shape index: {}]
  %s1 = inlined_call_operand.hbm [shape: f32[1,2048], index: 1, kind: input, shape index: {}]
  %s2 = inlined_call_operand.hbm [shape: f32[1,2048], index: 2, kind: output, shape index: {}]
  %s3 = sld [smem:[#allocation0]]
  $region26: #{tpu_custom_call.1} parent=0
    _
  %s5 = ssub.s32 1, %s3
  %s6 = scalar_select 0, %s5, %s3
  $region1: #{tpu_custom_call.1} parent=0
    #allocation2 [shape = 'u8[8192]{0}', space=vmem, size = 0x2000, scoped, tag = 'input window, operand 0, single buffered']
    #allocation3 [shape = 's32[1]{0}', space=sflag, size = 0x4, scoped, tag = 'scoped memory for tpu_custom_call.1']
    #allocation4 [shape = 's32[1]{0}', space=sflag, size = 0x4, scoped, tag = 'scoped memory for tpu_custom_call.1']
    #allocation5 [shape = 'u8[8192]{0}', space=vmem, size = 0x2000, scoped, tag = 'input window, operand 1, single buffered']
    #allocation6 [shape = 's32[1]{0}', space=sflag, size = 0x4, scoped, tag = 'scoped memory for tpu_custom_call.1']
    #allocation7 [shape = 'u8[8192]{0}', space=vmem, size = 0x2000, scoped, tag = 'output window, operand 0, single buffered']
    %7 = vsyncpa [#allocation3], 0
    %8 = vsyncpa [#allocation6], 0
    %9 = vsyncpa [#allocation4], 0
    // Predicated region
    $region2: #{tpu_custom_call.1} parent=1 // pred_check
      _
    $region3: #{tpu_custom_call.1} parent=1 // pred_check_branch
      %11 = sbr.rel (0) target = $region5
    $region4: #{tpu_custom_call.1} parent=1 // pred_region
      %s13 = ssub.s32 256, 256
      %14 = vsyncadd [#allocation3], %s13
      %s16 = sshll.u32 [#allocation2], 4
      %s17 = int_to_ptr.vmem [resolvable:$true] %s16
      %19 = dma.hbm_to_vmem [thread:$0]  %s0, 256, %s17, [#allocation3]
    $region5: #{tpu_custom_call.1} parent=1 // pred_fallthru
      _
    // Predicated region
    $region6: #{tpu_custom_call.1} parent=1 // pred_check
      _
    $region7: #{tpu_custom_call.1} parent=1 // pred_check_branch
      %21 = sbr.rel (0) target = $region9
    $region8: #{tpu_custom_call.1} parent=1 // pred_region
      %s23 = ssub.s32 256, 256
      %24 = vsyncadd [#allocation6], %s23
      %s26 = sshll.u32 [#allocation5], 4
      %s27 = int_to_ptr.vmem [resolvable:$true] %s26
      %29 = dma.hbm_to_vmem [thread:$0]  %s1, 256, %s27, [#allocation6]
    $region9: #{tpu_custom_call.1} parent=1 // pred_fallthru
      _
    // Predicated region
    $region10: #{tpu_custom_call.1} parent=1 // pred_check
      _
    $region11: #{tpu_custom_call.1} parent=1 // pred_check_branch
      %31 = sbr.rel (0) target = $region13
    $region12: #{tpu_custom_call.1} parent=1 // pred_region
      %32 = dma.done [#allocation3], 256
    $region13: #{tpu_custom_call.1} parent=1 // pred_fallthru
      _
    // Predicated region
    $region14: #{tpu_custom_call.1} parent=1 // pred_check
      _
    $region15: #{tpu_custom_call.1} parent=1 // pred_check_branch
      %34 = sbr.rel (0) target = $region17
    $region16: #{tpu_custom_call.1} parent=1 // pred_region
      %35 = dma.done [#allocation6], 256
    $region17: #{tpu_custom_call.1} parent=1 // pred_fallthru
      _
    %v36 = vld [vmem:[#allocation2] sm:$0xff]
    %v37 = vld [vmem:[#allocation2 + $0x8] sm:$0xff]
    %v38 = vld [vmem:[#allocation5] sm:$0xff]
    %v39 = vld [vmem:[#allocation5 + $0x8] sm:$0xff]
    %v40 = vadd.f32 %v36, %v38
    %v41 = vadd.f32 %v37, %v39
    %42 = vst [vmem:[#allocation7] sm:$0xff] %v40
    %43 = vst [vmem:[#allocation7 + $0x8] sm:$0xff] %v41
    // Predicated region
    $region18: #{tpu_custom_call.1} parent=1 // pred_check
      _
    $region19: #{tpu_custom_call.1} parent=1 // pred_check_branch
      %45 = sbr.rel (0) target = $region21
    $region20: #{tpu_custom_call.1} parent=1 // pred_region
      %s47 = ssub.s32 256, 256
      %48 = vsyncadd [#allocation4], %s47
      %s50 = sshll.u32 [#allocation7], 4
      %s51 = int_to_ptr.vmem [resolvable:$true] %s50
      %53 = dma.vmem_to_hbm [thread:$0]  %s51, 256, %s2, [#allocation4]
    $region21: #{tpu_custom_call.1} parent=1 // pred_fallthru
      _
    // Predicated region
    $region22: #{tpu_custom_call.1} parent=1 // pred_check
      _
    $region23: #{tpu_custom_call.1} parent=1 // pred_check_branch
      %55 = sbr.rel (0) target = $region25
    $region24: #{tpu_custom_call.1} parent=1 // pred_region
      %56 = dma.done [#allocation4], 256
    $region25: #{tpu_custom_call.1} parent=1 // pred_fallthru
      _
    %57 = vsyncpa [#allocation3], 1
    %58 = vsyncpa [#allocation6], 1
    %59 = vsyncpa [#allocation4], 1

</llo_original>
